<compile_context>
chip_gen: v6e
topology: v6e:2x2x1
jax: 0.10.0
libtpu: 0.0.40
codegen_flags: <defaults>
</compile_context>

<pallas_src>
import functools

import jax
import jax.numpy as jnp
from jax.experimental import pallas as pl
from jax.experimental.pallas import tpu as pltpu

SCALE = 1.0 / 4e-05  # 25000.0
N_CONCEPTS = 312     # hardcoded in the PyTorch module (expand(-1, 312))


def _round_up(x, m):
    return ((x + m - 1) // m) * m


def ss_concept_loss(predicted_concepts, class_logits, class_label,
                    concept_label, use_concept_labels, *,
                    store_inputs_bf16=False):
    """Returns (classification_loss, concept_loss) as f32 scalars."""
    B, NC = predicted_concepts.shape
    assert NC == N_CONCEPTS
    assert concept_label.shape == (B, N_CONCEPTS)
    C = class_logits.shape[-1]

    # ---- batch tiling: TB multiple of 8 (16 for bf16 sublane packing) -------
    sub = 16 if store_inputs_bf16 else 8
    TB = min(1024, _round_up(B, sub))
    n_tiles = pl.cdiv(B, TB)
    ragged = (B % TB) != 0          # last tile partially out of bounds

    pc, cl, lg = predicted_concepts, concept_label, class_logits
    if store_inputs_bf16:
        pc = pc.astype(jnp.bfloat16)
        cl = cl.astype(jnp.bfloat16)
        lg = lg.astype(jnp.bfloat16)

    # Side channel: col0 = class label (exact as f32 for C < 2^24), col1 = use.
    side = jnp.stack([class_label.astype(jnp.float32),
                      use_concept_labels.astype(jnp.float32)], axis=-1)  # (B,2)

    inv_b = 1.0 / B
    l1_scale = SCALE / (B * N_CONCEPTS)

    def kernel(pc_ref, cl_ref, logits_ref, side_ref,
               ce_out_ref, l1_out_ref, acc_ref):
        pid = pl.program_id(0)

        @pl.when(pid == 0)
        def _init():
            acc_ref[0] = 0.0
            acc_ref[1] = 0.0

        logits = logits_ref[...].astype(jnp.float32)                  # (TB, C)
        pcv = pc_ref[...].astype(jnp.float32)                         # (TB, 312)
        clv = cl_ref[...].astype(jnp.float32)                         # (TB, 312)
        labels_f = side_ref[:, 0:1]                                   # (TB, 1)
        use = side_ref[:, 1:2]                                        # (TB, 1)

        if ragged:
            # Rows past the true batch size hold unspecified data; mask them to
            # zero BEFORE any exp so garbage can never become inf/NaN.
            row = jax.lax.broadcasted_iota(jnp.int32, (TB, 1), 0) + pid * TB
            valid = row < B                                           # (TB, 1)
            logits = jnp.where(valid, logits, 0.0)
            pcv = jnp.where(valid, pcv, 0.0)
            clv = jnp.where(valid, clv, 0.0)
            use = jnp.where(valid, use, 0.0)
            valid_f = valid.astype(jnp.float32)

        # ---------------- CrossEntropyLoss partial sum ----------------------
        m = jnp.max(logits, axis=-1, keepdims=True)
        lse = m + jnp.log(jnp.sum(jnp.exp(logits - m), axis=-1, keepdims=True))
        col = jax.lax.broadcasted_iota(jnp.int32, (TB, C), 1)
        labels_i = labels_f.astype(jnp.int32)
        tgt = jnp.sum(jnp.where(col == labels_i, logits, 0.0),
                      axis=-1, keepdims=True)                         # (TB, 1)
        ce_terms = lse - tgt
        if ragged:
            ce_terms = ce_terms * valid_f
        acc_ref[0] += jnp.sum(ce_terms)

        # --------- masked L1 of softmaxes (SCALE hoisted to epilogue) -------
        def _softmax(x):
            mm = jnp.max(x, axis=-1, keepdims=True)
            e = jnp.exp(x - mm)
            return e / jnp.sum(e, axis=-1, keepdims=True)   # exact divide

        d = jnp.abs(_softmax(pcv) - _softmax(clv))                    # (TB, 312)
        acc_ref[1] += jnp.sum(jnp.sum(d, axis=-1, keepdims=True) * use)

        # ---------------- finalize ------------------------------------------
        @pl.when(pid == n_tiles - 1)
        def _fin():
            ce_out_ref[0] = acc_ref[0] * inv_b
            l1_out_ref[0] = acc_ref[1] * l1_scale

    # Per-step footprint (f32 upper bound): inputs double-buffered + temporaries.
    tile_bytes = TB * (2 * N_CONCEPTS + C + 2) * 4
    vmem_limit = int(min(48 * 1024 * 1024,
                         max(32 * 1024 * 1024, 8 * tile_bytes)))

    cost = pl.CostEstimate(
        flops=int(15 * B * N_CONCEPTS + 6 * B * C),
        transcendentals=int(2 * B * N_CONCEPTS + B * C + 2 * B),
        bytes_accessed=int(pc.dtype.itemsize * 2 * B * N_CONCEPTS
                           + lg.dtype.itemsize * B * C + 4 * B * 2 + 8),
    )

    ce, l1 = pl.pallas_call(
        kernel,
        out_shape=(jax.ShapeDtypeStruct((1,), jnp.float32),
                   jax.ShapeDtypeStruct((1,), jnp.float32)),
        grid=(n_tiles,),
        in_specs=[
            pl.BlockSpec((TB, N_CONCEPTS), lambda i: (i, 0)),
            pl.BlockSpec((TB, N_CONCEPTS), lambda i: (i, 0)),
            pl.BlockSpec((TB, C), lambda i: (i, 0)),
            pl.BlockSpec((TB, 2), lambda i: (i, 0)),
        ],
        out_specs=(pl.BlockSpec(memory_space=pltpu.MemorySpace.SMEM),
                   pl.BlockSpec(memory_space=pltpu.MemorySpace.SMEM)),
        scratch_shapes=[pltpu.SMEM((2,), jnp.float32)],
        compiler_params=pltpu.CompilerParams(
            dimension_semantics=("arbitrary",),
            vmem_limit_bytes=vmem_limit),
        cost_estimate=cost,
    )(pc, cl, lg, side)

    return ce[0], l1[0]


def _reference(predicted_concepts, class_logits, class_label, concept_label,
               use_concept_labels):
    # Pure-JAX reference (matches the PyTorch module).
    lse = jax.nn.logsumexp(class_logits, axis=-1)
    tgt = jnp.take_along_axis(class_logits, class_label[:, None], axis=-1)[:, 0]
    ce = jnp.mean(lse - tgt)
    u = use_concept_labels[:, None]
    a = SCALE * jax.nn.softmax(predicted_concepts, axis=-1) * u
    b = SCALE * jax.nn.softmax(concept_label, axis=-1) * u
    l1 = jnp.mean(jnp.abs(a - b))
    return ce, l1


def _run_case(key, B, C, store_bf16=False):
    k1, k2, k3, k4, k5 = jax.random.split(key, 5)
    predicted_concepts = jax.random.normal(k1, (B, N_CONCEPTS), jnp.float32)
    concept_label = jax.random.normal(k2, (B, N_CONCEPTS), jnp.float32)
    class_logits = jax.random.normal(k3, (B, C), jnp.float32)
    class_label = jax.random.randint(k4, (B,), 0, C, jnp.int32)
    use_concept_labels = (jax.random.uniform(k5, (B,)) > 0.5).astype(jnp.float32)

    fn = jax.jit(functools.partial(ss_concept_loss,
                                   store_inputs_bf16=store_bf16))
    ce, l1 = fn(predicted_concepts, class_logits, class_label,
                concept_label, use_concept_labels)
    jax.block_until_ready((ce, l1))

    if store_bf16:
        # Compare against the reference evaluated on the bf16-rounded inputs
        # (the kernel does all math in f32 after upcasting).
        pc_r = predicted_concepts.astype(jnp.bfloat16).astype(jnp.float32)
        cl_r = concept_label.astype(jnp.bfloat16).astype(jnp.float32)
        lg_r = class_logits.astype(jnp.bfloat16).astype(jnp.float32)
    else:
        pc_r, cl_r, lg_r = predicted_concepts, concept_label, class_logits

    ce_ref, l1_ref = _reference(pc_r, lg_r, class_label, cl_r,
                                use_concept_labels)
    assert jnp.allclose(ce, ce_ref, rtol=1e-5, atol=1e-5), (ce, ce_ref)
    assert jnp.allclose(l1, l1_ref, rtol=1e-4, atol=1e-2), (l1, l1_ref)


if __name__ == "__main__":
    key = jax.random.PRNGKey(0)
    ka, kb, kc = jax.random.split(key, 3)

    # Small shape consistent with the module (B=2, 312 concepts, 16 classes).
    _run_case(ka, B=2, C=16)
    # Non-multiple-of-tile batch to exercise the ragged last tile (CUB C=200).
    _run_case(kb, B=10, C=200)
    # bf16-storage path (HBM-bound v5e/v6e option; math stays f32).
    _run_case(kc, B=10, C=200, store_bf16=True)

    print("KERNEL_OK")
</pallas_src>

<mosaic_0001>
module attributes {stable_mosaic.version = 11 : i64} {
  func.func @kernel(%arg0: i32, %arg1: memref<8x312xf32, #tpu.memory_space<vmem>>, %arg2: memref<8x312xf32, #tpu.memory_space<vmem>>, %arg3: memref<8x16xf32, #tpu.memory_space<vmem>>, %arg4: memref<8x2xf32, #tpu.memory_space<vmem>>, %arg5: memref<1xf32, #tpu.memory_space<smem>>, %arg6: memref<1xf32, #tpu.memory_space<smem>>, %arg7: memref<2xf32, #tpu.memory_space<smem>>) attributes {dimension_semantics = [#tpu.dimension_semantics<arbitrary>], iteration_bounds = array<i64: 1>, scalar_prefetch = 0 : i64, scratch_operands = 1 : i64, tpu.core_type = #tpu.core_type<tc>, window_params = [{transform_indices = @transform_0, window_bounds = array<i64: 8, 312>}, {transform_indices = @transform_1, window_bounds = array<i64: 8, 312>}, {transform_indices = @transform_2, window_bounds = array<i64: 8, 16>}, {transform_indices = @transform_3, window_bounds = array<i64: 8, 2>}, {transform_indices = @transform_4, window_bounds = array<i64: 1>}, {transform_indices = @transform_5, window_bounds = array<i64: 1>}]} {
    %c0_i32 = arith.constant 0 : i32
    %0 = arith.cmpi eq, %arg0, %c0_i32 : i32
    %1 = arith.extui %0 : i1 to i32
    %c0_i32_0 = arith.constant 0 : i32
    %2 = arith.cmpi ne, %1, %c0_i32_0 : i32
    scf.if %2 {
      %cst_29 = arith.constant 0.000000e+00 : f32
      %c0_30 = arith.constant 0 : index
      %89 = memref.load %arg7[%c0_30] : memref<2xf32, #tpu.memory_space<smem>>
      memref.store %cst_29, %arg7[%c0_30] : memref<2xf32, #tpu.memory_space<smem>>
      %cst_31 = arith.constant 0.000000e+00 : f32
      %c1_32 = arith.constant 1 : index
      %90 = memref.load %arg7[%c1_32] : memref<2xf32, #tpu.memory_space<smem>>
      memref.store %cst_31, %arg7[%c1_32] : memref<2xf32, #tpu.memory_space<smem>>
    } else {
    }
    %c0 = arith.constant 0 : index
    %c0_1 = arith.constant 0 : index
    %3 = vector.load %arg3[%c0, %c0_1] : memref<8x16xf32, #tpu.memory_space<vmem>>, vector<8x16xf32>
    %c0_2 = arith.constant 0 : index
    %c0_3 = arith.constant 0 : index
    %4 = vector.load %arg1[%c0_2, %c0_3] : memref<8x312xf32, #tpu.memory_space<vmem>>, vector<8x312xf32>
    %c0_4 = arith.constant 0 : index
    %c0_5 = arith.constant 0 : index
    %5 = vector.load %arg2[%c0_4, %c0_5] : memref<8x312xf32, #tpu.memory_space<vmem>>, vector<8x312xf32>
    %c0_6 = arith.constant 0 : index
    %c0_7 = arith.constant 0 : index
    %6 = vector.load %arg4[%c0_6, %c0_7] : memref<8x2xf32, #tpu.memory_space<vmem>>, vector<8x1xf32>
    %c0_8 = arith.constant 0 : index
    %c1 = arith.constant 1 : index
    %7 = vector.load %arg4[%c0_8, %c1] : memref<8x2xf32, #tpu.memory_space<vmem>>, vector<8x1xf32>
    %8 = tpu.iota {dimensions = array<i32: 0>} : vector<8x1xi32>
    %c8_i32 = arith.constant 8 : i32
    %9 = arith.muli %arg0, %c8_i32 : i32
    %10 = vector.broadcast %9 : i32 to vector<8x1xi32>
    %11 = arith.addi %8, %10 : vector<8x1xi32>
    %c2_i32 = arith.constant 2 : i32
    %12 = vector.broadcast %c2_i32 : i32 to vector<8x1xi32>
    %13 = arith.cmpi slt, %11, %12 : vector<8x1xi32>
    %cst = arith.constant 0.000000e+00 : f32
    %14 = vector.shape_cast %13 : vector<8x1xi1> to vector<8x1xi1>
    %15 = vector.broadcast %14 : vector<8x1xi1> to vector<8x16xi1>
    %16 = vector.broadcast %cst : f32 to vector<8x16xf32>
    %17 = arith.select %15, %3, %16 : vector<8x16xi1>, vector<8x16xf32>
    %cst_9 = arith.constant 0.000000e+00 : f32
    %18 = vector.shape_cast %13 : vector<8x1xi1> to vector<8x1xi1>
    %19 = vector.broadcast %18 : vector<8x1xi1> to vector<8x312xi1>
    %20 = vector.broadcast %cst_9 : f32 to vector<8x312xf32>
    %21 = arith.select %19, %4, %20 : vector<8x312xi1>, vector<8x312xf32>
    %cst_10 = arith.constant 0.000000e+00 : f32
    %22 = vector.shape_cast %13 : vector<8x1xi1> to vector<8x1xi1>
    %23 = vector.broadcast %22 : vector<8x1xi1> to vector<8x312xi1>
    %24 = vector.broadcast %cst_10 : f32 to vector<8x312xf32>
    %25 = arith.select %23, %5, %24 : vector<8x312xi1>, vector<8x312xf32>
    %cst_11 = arith.constant 0.000000e+00 : f32
    %26 = vector.broadcast %cst_11 : f32 to vector<8x1xf32>
    %27 = arith.select %13, %7, %26 : vector<8x1xi1>, vector<8x1xf32>
    %28 = arith.extui %13 : vector<8x1xi1> to vector<8x1xi32>
    %29 = arith.sitofp %28 : vector<8x1xi32> to vector<8x1xf32>
    %cst_12 = arith.constant dense<0xFF800000> : vector<8xf32>
    %30 = vector.multi_reduction <maximumf>, %17, %cst_12 [1] : vector<8x16xf32> to vector<8xf32>
    %31 = vector.shape_cast %30 : vector<8xf32> to vector<8x1xf32>
    %32 = vector.broadcast %31 : vector<8x1xf32> to vector<8x16xf32>
    %33 = arith.subf %17, %32 : vector<8x16xf32>
    %34 = math.exp %33 : vector<8x16xf32>
    %cst_13 = arith.constant dense<0.000000e+00> : vector<8xf32>
    %35 = vector.multi_reduction <add>, %34, %cst_13 [1] : vector<8x16xf32> to vector<8xf32>
    %36 = vector.shape_cast %35 : vector<8xf32> to vector<8x1xf32>
    %37 = math.log %36 : vector<8x1xf32>
    %38 = arith.addf %31, %37 : vector<8x1xf32>
    %39 = tpu.iota {dimensions = array<i32: 1>} : vector<8x16xi32>
    %40 = arith.fptosi %6 : vector<8x1xf32> to vector<8x1xi32>
    %41 = vector.broadcast %40 : vector<8x1xi32> to vector<8x16xi32>
    %42 = arith.cmpi eq, %39, %41 : vector<8x16xi32>
    %cst_14 = arith.constant 0.000000e+00 : f32
    %43 = vector.broadcast %cst_14 : f32 to vector<8x16xf32>
    %44 = arith.select %42, %17, %43 : vector<8x16xi1>, vector<8x16xf32>
    %cst_15 = arith.constant dense<0.000000e+00> : vector<8xf32>
    %45 = vector.multi_reduction <add>, %44, %cst_15 [1] : vector<8x16xf32> to vector<8xf32>
    %46 = vector.shape_cast %45 : vector<8xf32> to vector<8x1xf32>
    %47 = arith.subf %38, %46 : vector<8x1xf32>
    %48 = arith.mulf %47, %29 : vector<8x1xf32>
    %c0_16 = arith.constant 0 : index
    %49 = memref.load %arg7[%c0_16] : memref<2xf32, #tpu.memory_space<smem>>
    %50 = vector.shape_cast %48 : vector<8x1xf32> to vector<1x8x1xf32>
    %cst_17 = arith.constant dense<0.000000e+00> : vector<1xf32>
    %51 = vector.multi_reduction <add>, %50, %cst_17 [1, 2] : vector<1x8x1xf32> to vector<1xf32>
    %52 = vector.shape_cast %51 : vector<1xf32> to vector<1x1x1xf32>
    %53 = vector.extract %52[0, 0, 0] : f32 from vector<1x1x1xf32>
    %54 = arith.addf %49, %53 : f32
    %c0_18 = arith.constant 0 : index
    %55 = memref.load %arg7[%c0_18] : memref<2xf32, #tpu.memory_space<smem>>
    memref.store %54, %arg7[%c0_18] : memref<2xf32, #tpu.memory_space<smem>>
    %cst_19 = arith.constant dense<0xFF800000> : vector<8xf32>
    %56 = vector.multi_reduction <maximumf>, %21, %cst_19 [1] : vector<8x312xf32> to vector<8xf32>
    %57 = vector.shape_cast %56 : vector<8xf32> to vector<8x1xf32>
    %58 = vector.broadcast %57 : vector<8x1xf32> to vector<8x312xf32>
    %59 = arith.subf %21, %58 : vector<8x312xf32>
    %60 = math.exp %59 : vector<8x312xf32>
    %cst_20 = arith.constant dense<0.000000e+00> : vector<8xf32>
    %61 = vector.multi_reduction <add>, %60, %cst_20 [1] : vector<8x312xf32> to vector<8xf32>
    %62 = vector.shape_cast %61 : vector<8xf32> to vector<8x1xf32>
    %63 = vector.broadcast %62 : vector<8x1xf32> to vector<8x312xf32>
    %64 = arith.divf %60, %63 : vector<8x312xf32>
    %cst_21 = arith.constant dense<0xFF800000> : vector<8xf32>
    %65 = vector.multi_reduction <maximumf>, %25, %cst_21 [1] : vector<8x312xf32> to vector<8xf32>
    %66 = vector.shape_cast %65 : vector<8xf32> to vector<8x1xf32>
    %67 = vector.broadcast %66 : vector<8x1xf32> to vector<8x312xf32>
    %68 = arith.subf %25, %67 : vector<8x312xf32>
    %69 = math.exp %68 : vector<8x312xf32>
    %cst_22 = arith.constant dense<0.000000e+00> : vector<8xf32>
    %70 = vector.multi_reduction <add>, %69, %cst_22 [1] : vector<8x312xf32> to vector<8xf32>
    %71 = vector.shape_cast %70 : vector<8xf32> to vector<8x1xf32>
    %72 = vector.broadcast %71 : vector<8x1xf32> to vector<8x312xf32>
    %73 = arith.divf %69, %72 : vector<8x312xf32>
    %74 = arith.subf %64, %73 : vector<8x312xf32>
    %75 = math.absf %74 : vector<8x312xf32>
    %c1_23 = arith.constant 1 : index
    %76 = memref.load %arg7[%c1_23] : memref<2xf32, #tpu.memory_space<smem>>
    %cst_24 = arith.constant dense<0.000000e+00> : vector<8xf32>
    %77 = vector.multi_reduction <add>, %75, %cst_24 [1] : vector<8x312xf32> to vector<8xf32>
    %78 = vector.shape_cast %77 : vector<8xf32> to vector<8x1xf32>
    %79 = arith.mulf %78, %27 : vector<8x1xf32>
    %80 = vector.shape_cast %79 : vector<8x1xf32> to vector<1x8x1xf32>
    %cst_25 = arith.constant dense<0.000000e+00> : vector<1xf32>
    %81 = vector.multi_reduction <add>, %80, %cst_25 [1, 2] : vector<1x8x1xf32> to vector<1xf32>
    %82 = vector.shape_cast %81 : vector<1xf32> to vector<1x1x1xf32>
    %83 = vector.extract %82[0, 0, 0] : f32 from vector<1x1x1xf32>
    %84 = arith.addf %76, %83 : f32
    %c1_26 = arith.constant 1 : index
    %85 = memref.load %arg7[%c1_26] : memref<2xf32, #tpu.memory_space<smem>>
    memref.store %84, %arg7[%c1_26] : memref<2xf32, #tpu.memory_space<smem>>
    %c0_i32_27 = arith.constant 0 : i32
    %86 = arith.cmpi eq, %arg0, %c0_i32_27 : i32
    %87 = arith.extui %86 : i1 to i32
    %c0_i32_28 = arith.constant 0 : i32
    %88 = arith.cmpi ne, %87, %c0_i32_28 : i32
    scf.if %88 {
      %c0_29 = arith.constant 0 : index
      %89 = memref.load %arg7[%c0_29] : memref<2xf32, #tpu.memory_space<smem>>
      %cst_30 = arith.constant 5.000000e-01 : f32
      %90 = arith.mulf %89, %cst_30 : f32
      %c0_31 = arith.constant 0 : index
      %91 = memref.load %arg5[%c0_31] : memref<1xf32, #tpu.memory_space<smem>>
      memref.store %90, %arg5[%c0_31] : memref<1xf32, #tpu.memory_space<smem>>
      %c1_32 = arith.constant 1 : index
      %92 = memref.load %arg7[%c1_32] : memref<2xf32, #tpu.memory_space<smem>>
      %cst_33 = arith.constant 40.0641022 : f32
      %93 = arith.mulf %92, %cst_33 : f32
      %c0_34 = arith.constant 0 : index
      %94 = memref.load %arg6[%c0_34] : memref<1xf32, #tpu.memory_space<smem>>
      memref.store %93, %arg6[%c0_34] : memref<1xf32, #tpu.memory_space<smem>>
    } else {
    }
    return
  }
  func.func @transform_0(%arg0: i32) -> (i32, i32) {
    %c0_i32 = arith.constant 0 : i32
    %c0_i32_0 = arith.constant 0 : i32
    return %arg0, %c0_i32 : i32, i32
  }
  func.func @transform_1(%arg0: i32) -> (i32, i32) {
    %c0_i32 = arith.constant 0 : i32
    %c0_i32_0 = arith.constant 0 : i32
    return %arg0, %c0_i32 : i32, i32
  }
  func.func @transform_2(%arg0: i32) -> (i32, i32) {
    %c0_i32 = arith.constant 0 : i32
    %c0_i32_0 = arith.constant 0 : i32
    return %arg0, %c0_i32 : i32, i32
  }
  func.func @transform_3(%arg0: i32) -> (i32, i32) {
    %c0_i32 = arith.constant 0 : i32
    %c0_i32_0 = arith.constant 0 : i32
    return %arg0, %c0_i32 : i32, i32
  }
  func.func @transform_4(%arg0: i32) -> i32 {
    %c0_i32 = arith.constant 0 : i32
    %c0_i32_0 = arith.constant 0 : i32
    return %c0_i32 : i32
  }
  func.func @transform_5(%arg0: i32) -> i32 {
    %c0_i32 = arith.constant 0 : i32
    %c0_i32_0 = arith.constant 0 : i32
    return %c0_i32 : i32
  }
}

</mosaic_0001>

<llo_original>
// kernel: ss_concept_loss.1
$region0: #{ss_concept_loss.1}
  #allocation0 [shape = 'u32[]', space=smem, size = 0x4, offset = 0x4, fixed_abs, tag = 'smem constant byte address 0x4 - core index']
  #allocation1 [shape = 'u32[144,128]{1,0:T(1,128)}', space=vmem, size = 0x12000, scoped, tag = 'internal scratch']
  #allocation2 [shape = 'f32[2]{0:T(128)}', space=smem, size = 0x200, scoped, tag = 'scratch operand']
  %s0 = inlined_call_operand.vmem [shape: f32[2,312], index: 0, kind: input, shape index: {}]
  %s1 = inlined_call_operand.vmem [shape: f32[2,312], index: 1, kind: input, shape index: {}]
  %s2 = inlined_call_operand.vmem [shape: f32[2,16], index: 2, kind: input, shape index: {}]
  %s3 = inlined_call_operand.vmem [shape: f32[2,2], index: 3, kind: input, shape index: {}]
  %s4 = inlined_call_operand.hbm [shape: f32[1], index: 4, kind: output, shape index: {0}]
  %s5 = inlined_call_operand.hbm [shape: f32[1], index: 5, kind: output, shape index: {1}]
  %6 = xla_tuple %s4, %s5
  %s7 = sld [smem:[#allocation0]]
  $region42: #{ss_concept_loss.1} parent=0
    _
  %s9 = ssub.s32 1, %s7
  %s10 = scalar_select 0, %s9, %s7
  $region1: #{ss_concept_loss.1} parent=0
    #allocation3 [shape = 'u8[512]{0}', space=smem, size = 0x200, scoped, tag = 'output window, operand 0, single buffered']
    #allocation4 [shape = 's32[1]{0}', space=sflag, size = 0x4, scoped, tag = 'scoped memory for ss_concept_loss.1']
    #allocation5 [shape = 'u8[512]{0}', space=smem, size = 0x200, scoped, tag = 'output window, operand 1, single buffered']
    #allocation6 [shape = 's32[1]{0}', space=sflag, size = 0x4, scoped, tag = 'scoped memory for ss_concept_loss.1']
    %11 = vsyncpa [#allocation4], 0
    %12 = vsyncpa [#allocation6], 0
    // Predicated region
    $region2: #{ss_concept_loss.1} parent=1 // pred_check
      _
    $region3: #{ss_concept_loss.1} parent=1 // pred_check_branch
      %14 = sbr.rel (0) target = $region5
    $region4: #{ss_concept_loss.1} parent=1 // pred_region
      _
    $region5: #{ss_concept_loss.1} parent=1 // pred_fallthru
      _
    // Predicated region
    $region6: #{ss_concept_loss.1} parent=1 // pred_check
      _
    $region7: #{ss_concept_loss.1} parent=1 // pred_check_branch
      %16 = sbr.rel (0) target = $region9
    $region8: #{ss_concept_loss.1} parent=1 // pred_region
      _
    $region9: #{ss_concept_loss.1} parent=1 // pred_fallthru
      _
    // Predicated region
    $region10: #{ss_concept_loss.1} parent=1 // pred_check
      _
    $region11: #{ss_concept_loss.1} parent=1 // pred_check_branch
      %18 = sbr.rel (0) target = $region13
    $region12: #{ss_concept_loss.1} parent=1 // pred_region
      _
    $region13: #{ss_concept_loss.1} parent=1 // pred_fallthru
      _
    // Predicated region
    $region14: #{ss_concept_loss.1} parent=1 // pred_check
      _
    $region15: #{ss_concept_loss.1} parent=1 // pred_check_branch
      %20 = sbr.rel (0) target = $region17
    $region16: #{ss_concept_loss.1} parent=1 // pred_region
      _
    $region17: #{ss_concept_loss.1} parent=1 // pred_fallthru
      _
    %p21 = scmp.eq.s32.totalorder 0, 0
    // Predicated region
    $region18: #{ss_concept_loss.1} parent=1 // pred_check
      %p22 = pneg %p21
    $region19: #{ss_concept_loss.1} parent=1 // pred_check_branch
      %24 = sbr.rel (%p22) target = $region21
    $region20: #{ss_concept_loss.1} parent=1 // pred_region
      %s25 = scalar_lea.smem [#allocation2], 0
      %26 = sst [smem:[%s25]] 0.0
      %s27 = scalar_lea.smem [#allocation2], 1
      %28 = sst [smem:[%s27]] 0.0
    $region21: #{ss_concept_loss.1} parent=1 // pred_fallthru
      _
    %v29 = vld [vmem:[%s2] sm:$0xff]
    %v30 = vld [vmem:[%s0] sm:$0x3f]
    %v31 = vld [vmem:[%s0 + $0x6] sm:$0x3f]
    %v32 = vld [vmem:[%s0 + $0xc] sm:$0x3f]
    %v33 = vld [vmem:[%s0 + $0x12] sm:$0x3f]
    %v34 = vld [vmem:[%s1] sm:$0x3f]
    %v35 = vld [vmem:[%s1 + $0x6] sm:$0x3f]
    %v36 = vld [vmem:[%s1 + $0xc] sm:$0x3f]
    %v37 = vld [vmem:[%s1 + $0x12] sm:$0x3f]
    %v38 = vld [vmem:[%s3] sm:$0xff]
    %v39 = vlaneseq
    %v40 = vshrl.u32 %v39, 7
    %s41 = smul.u32 0, 8
    %v42 = vstv %s41
    %v43 = vadd.s32 %v40, %v42
    %vm44 = vcmp.lt.s32.totalorder %v43, 2
    %v45 = vsel %vm44, 1, 0
    %vm46 = vcmp.eq.s32.totalorder %v45, 1
    %v47 = vsel %vm46, %v29, 0.0
    %v52 = vcombine.low %v30, %v31
    %v53 = vcombine.high %v30, %v31
    %v54 = vcombine.low %v32, %v33
    %v55 = vcombine.high %v32, %v33
    %v57 = vunpack.c.l.s4 1983009808
    %v58 = vunpack.c.0.s8 %v57
    %v59 = vlaneseq
    %v60 = vshrl.u32 %v59, 7
    %v61 = vsub.s32 %v58, %v60
    %v62 = vrot.slane %v52, %v61
    %v64 = vunpack.c.l.s4 1983009808
    %v65 = vunpack.c.0.s8 %v64
    %v66 = vlaneseq
    %v67 = vshrl.u32 %v66, 7
    %v68 = vsub.s32 %v65, %v67
    %v69 = vrot.slane %v53, %v68
    %v71 = vunpack.c.l.s4 1983009808
    %v72 = vunpack.c.0.s8 %v71
    %v73 = vlaneseq
    %v74 = vshrl.u32 %v73, 7
    %v75 = vsub.s32 %v72, %v74
    %v76 = vrot.slane %v54, %v75
    %v78 = vunpack.c.l.s4 1983009808
    %v79 = vunpack.c.0.s8 %v78
    %v80 = vlaneseq
    %v81 = vshrl.u32 %v80, 7
    %v82 = vsub.s32 %v79, %v81
    %v83 = vrot.slane %v55, %v82
    %v84 = vcombine.low %v62, %v76
    %v85 = vcombine.high %v62, %v76
    %v86 = vcombine.low %v69, %v83
    %v90 = vsel %vm46, %v84, 0.0
    %v91 = vsel %vm46, %v85, 0.0
    %v92 = vsel %vm46, %v86, 0.0
    %v97 = vcombine.low %v34, %v35
    %v98 = vcombine.high %v34, %v35
    %v99 = vcombine.low %v36, %v37
    %v100 = vcombine.high %v36, %v37
    %v102 = vunpack.c.l.s4 1983009808
    %v103 = vunpack.c.0.s8 %v102
    %v104 = vlaneseq
    %v105 = vshrl.u32 %v104, 7
    %v106 = vsub.s32 %v103, %v105
    %v107 = vrot.slane %v97, %v106
    %v109 = vunpack.c.l.s4 1983009808
    %v110 = vunpack.c.0.s8 %v109
    %v111 = vlaneseq
    %v112 = vshrl.u32 %v111, 7
    %v113 = vsub.s32 %v110, %v112
    %v114 = vrot.slane %v98, %v113
    %v116 = vunpack.c.l.s4 1983009808
    %v117 = vunpack.c.0.s8 %v116
    %v118 = vlaneseq
    %v119 = vshrl.u32 %v118, 7
    %v120 = vsub.s32 %v117, %v119
    %v121 = vrot.slane %v99, %v120
    %v123 = vunpack.c.l.s4 1983009808
    %v124 = vunpack.c.0.s8 %v123
    %v125 = vlaneseq
    %v126 = vshrl.u32 %v125, 7
    %v127 = vsub.s32 %v124, %v126
    %v128 = vrot.slane %v100, %v127
    %v129 = vcombine.low %v107, %v121
    %v130 = vcombine.high %v107, %v121
    %v131 = vcombine.low %v114, %v128
    %v135 = vsel %vm46, %v129, 0.0
    %v136 = vsel %vm46, %v130, 0.0
    %v137 = vsel %vm46, %v131, 0.0
    %v138 = vsel %vm44, %v38, 0.0
    %v139 = vcvt.s32.f32 %v45
    %vm140 = vcmask 130048
    %v141 = vsel %vm140, %v47, -inf
    %142 = vmax.xlane.f32.xlu0 %v141
    %v143 = vpop.xlane.xlu0 %142
    %v144 = vsub.f32 %v47, %v143
    %v145 = vmul.f32 %v144, 1.442695
    %v146 = vpow.pop %v145
    %v147 = vsel %vm140, %v146, 0.0
    %148 = vadd.xlane.f32.xlu0 %v147
    %v149 = vpop.xlane.xlu0 %148
    %v150 = vlog2.pop %v149
    %v151 = vmul.f32 %v150, 0.6931472
    %v152 = vadd.f32 %v143, %v151
    %v153 = vlaneseq
    %v154 = vand.u32 %v153, 127
    %v155 = vcvt.f32.s32.to.zero.pseudo %v38
    %156 = vset.pattern.permute.xlu0 0
    %157 = vperm.xlu0 %156, %v155
    %v158 = vpop.permute.xlu0 %157
    %vm159 = vcmp.eq.s32.totalorder %v154, %v158
    %v160 = vsel %vm159, %v47, 0.0
    %v161 = vsel %vm140, %v160, 0.0
    %162 = vadd.xlane.f32.xlu0 %v161
    %v163 = vpop.xlane.xlu0 %162
    %v164 = vsub.f32 %v152, %v163
    %v165 = vmul.f32 %v164, %v139
    %s166 = sld [smem:[#allocation2]]
    %vm167 = vcmask 7168
    %v168 = vsel %vm167, %v165, 0.0
    %169 = vadd.xlane.f32.xlu0 %v168
    %v170 = vpop.xlane.xlu0 %169
    %v171 = vrot.slane %v170, 4
    %v172 = vadd.f32 %v170, %v171
    %v173 = vrot.slane %v172, 2
    %v174 = vadd.f32 %v172, %v173
    %v175 = vrot.slane %v174, 1
    %v176 = vadd.f32 %v174, %v175
    %s177 = vtos %v176
    %s178 = sadd.f32 %s166, %s177
    %s179 = scalar_lea.smem [#allocation2], 0
    %180 = sst [smem:[%s179]] %s178
    %vm181 = vcmask 457728
    %v182 = vsel %vm181, %v92, -inf
    %v183 = vmax.f32 %v90, %v91
    %v184 = vmax.f32 %v183, %v182
    %185 = vmax.xlane.f32.xlu0 %v184
    %v186 = vpop.xlane.xlu0 %185
    %v187 = vsub.f32 %v90, %v186
    %v188 = vsub.f32 %v91, %v186
    %v189 = vsub.f32 %v92, %v186
    %v190 = vmul.f32 %v187, 1.442695
    %v191 = vpow.pop %v190
    %v192 = vmul.f32 %v188, 1.442695
    %v193 = vpow.pop %v192
    %v194 = vmul.f32 %v189, 1.442695
    %v195 = vpow.pop %v194
    %v196 = vadd.f32 %v191, %v193
    %v197 = vsel %vm181, %v195, 0.0
    %v198 = vadd.f32 %v196, %v197
    %199 = vadd.xlane.f32.xlu0 %v198
    %v200 = vpop.xlane.xlu0 %199
    %v201 = vrcp.pop %v200
    %v202 = vmul.f32 %v191, %v201
    %v203 = vmul.f32 %v193, %v201
    %v204 = vmul.f32 %v195, %v201
    %v205 = vsel %vm181, %v137, -inf
    %v206 = vmax.f32 %v135, %v136
    %v207 = vmax.f32 %v206, %v205
    %208 = vmax.xlane.f32.xlu0 %v207
    %v209 = vpop.xlane.xlu0 %208
    %v210 = vsub.f32 %v135, %v209
    %v211 = vsub.f32 %v136, %v209
    %v212 = vsub.f32 %v137, %v209
    %v213 = vmul.f32 %v210, 1.442695
    %v214 = vpow.pop %v213
    %v215 = vmul.f32 %v211, 1.442695
    %v216 = vpow.pop %v215
    %v217 = vmul.f32 %v212, 1.442695
    %v218 = vpow.pop %v217
    %v219 = vadd.f32 %v214, %v216
    %v220 = vsel %vm181, %v218, 0.0
    %v221 = vadd.f32 %v219, %v220
    %222 = vadd.xlane.f32.xlu0 %v221
    %v223 = vpop.xlane.xlu0 %222
    %v224 = vrcp.pop %v223
    %v225 = vmul.f32 %v214, %v224
    %v226 = vmul.f32 %v216, %v224
    %v227 = vmul.f32 %v218, %v224
    %v228 = vsub.f32 %v202, %v225
    %v229 = vsub.f32 %v203, %v226
    %v230 = vsub.f32 %v204, %v227
    %v231 = vand.u32 2147483647, %v228
    %v232 = vand.u32 2147483647, %v229
    %v233 = vand.u32 2147483647, %v230
    %s234 = sld [smem:[#allocation2 + $0x1]]
    %v235 = vadd.f32 %v231, %v232
    %v236 = vsel %vm181, %v233, 0.0
    %v237 = vadd.f32 %v235, %v236
    %238 = vadd.xlane.f32.xlu0 %v237
    %v239 = vpop.xlane.xlu0 %238
    %v240 = vmul.f32 %v239, %v138
    %242 = vrot.lane.b32.xlu0 %v240, 127
    %v243 = vpop.permute.xlu0 %242
    %v245 = vsel %vm167, %v243, 0.0
    %246 = vadd.xlane.f32.xlu0 %v245
    %v247 = vpop.xlane.xlu0 %246
    %v248 = vrot.slane %v247, 4
    %v249 = vadd.f32 %v247, %v248
    %v250 = vrot.slane %v249, 2
    %v251 = vadd.f32 %v249, %v250
    %v252 = vrot.slane %v251, 1
    %v253 = vadd.f32 %v251, %v252
    %s254 = vtos %v253
    %s255 = sadd.f32 %s234, %s254
    %s256 = scalar_lea.smem [#allocation2], 1
    %257 = sst [smem:[%s256]] %s255
    // Predicated region
    $region22: #{ss_concept_loss.1} parent=1 // pred_check
      %p258 = pneg %p21
    $region23: #{ss_concept_loss.1} parent=1 // pred_check_branch
      %260 = sbr.rel (%p258) target = $region25
    $region24: #{ss_concept_loss.1} parent=1 // pred_region
      %s261 = sld [smem:[#allocation2]]
      %s262 = smul.f32 %s261, 0.5
      %s263 = scalar_lea.smem [#allocation3], 0
      %264 = sst [smem:[%s263]] %s262
      %s265 = sld [smem:[#allocation2 + $0x1]]
      %s266 = smul.f32 %s265, 40.064102
      %s267 = scalar_lea.smem [#allocation5], 0
      %268 = sst [smem:[%s267]] %s266
    $region25: #{ss_concept_loss.1} parent=1 // pred_fallthru
      _
    // Predicated region
    $region26: #{ss_concept_loss.1} parent=1 // pred_check
      _
    $region27: #{ss_concept_loss.1} parent=1 // pred_check_branch
      %270 = sbr.rel (0) target = $region29
    $region28: #{ss_concept_loss.1} parent=1 // pred_region
      %s272 = ssub.s32 16, 16
      %273 = vsyncadd [#allocation4], %s272
      %276 = dma.smem_to_hbm [#allocation3], 16, %s4, [#allocation4]
    $region29: #{ss_concept_loss.1} parent=1 // pred_fallthru
      _
    // Predicated region
    $region30: #{ss_concept_loss.1} parent=1 // pred_check
      _
    $region31: #{ss_concept_loss.1} parent=1 // pred_check_branch
      %278 = sbr.rel (0) target = $region33
    $region32: #{ss_concept_loss.1} parent=1 // pred_region
      %s280 = ssub.s32 16, 16
      %281 = vsyncadd [#allocation6], %s280
      %284 = dma.smem_to_hbm [#allocation5], 16, %s5, [#allocation6]
    $region33: #{ss_concept_loss.1} parent=1 // pred_fallthru
      _
    // Predicated region
    $region34: #{ss_concept_loss.1} parent=1 // pred_check
      _
    $region35: #{ss_concept_loss.1} parent=1 // pred_check_branch
      %286 = sbr.rel (0) target = $region37
    $region36: #{ss_concept_loss.1} parent=1 // pred_region
      %287 = dma.done [#allocation4], 16
    $region37: #{ss_concept_loss.1} parent=1 // pred_fallthru
      _
    // Predicated region
    $region38: #{ss_concept_loss.1} parent=1 // pred_check
      _
    $region39: #{ss_concept_loss.1} parent=1 // pred_check_branch
      %289 = sbr.rel (0) target = $region41
    $region40: #{ss_concept_loss.1} parent=1 // pred_region
      %290 = dma.done [#allocation6], 16
    $region41: #{ss_concept_loss.1} parent=1 // pred_fallthru
      _
    %291 = sfence
    %292 = vsyncpa [#allocation4], 1
    %293 = vsyncpa [#allocation6], 1

</llo_original>
